<compile_context>
chip_gen: v6e
topology: v6e:2x2x1
jax: 0.10.0
libtpu: 0.0.40
codegen_flags: <defaults>
</compile_context>

<pallas_src>
import functools
import math

import jax
import jax.numpy as jnp
from jax import lax
from jax.experimental import pallas as pl
from jax.experimental.pallas import tpu as pltpu

LANES = 128
OUT_SUBLANES = 8                 # partial-sum output tile is (8, 128) f32
TARGET_BLOCK_BYTES = 4 << 20     # ~4 MiB per input per grid step
MIN_KERNEL_ELEMS = 128 * LANES   # below this, fused XLA beats pallas launch


def _sublane_tile(dtype):
    # Rows per vreg: 8 for 4-byte, 16 for 2-byte, 32 for 1-byte dtypes.
    return max(OUT_SUBLANES, 32 // jnp.dtype(dtype).itemsize)


def _focal_elementwise(pred, true, gamma, alpha):
    """Fallback / 'none'-reduction math (pure jnp, fused by XLA)."""
    pred = pred.astype(jnp.float32)
    true = true.astype(jnp.float32)
    bce = (jnp.maximum(pred, 0.0) - pred * true
           + jnp.log1p(jnp.exp(-jnp.abs(pred))))
    p = jax.nn.sigmoid(pred)
    one_minus_pt = jnp.maximum(p + true - 2.0 * p * true, 0.0)
    alpha_factor = (1.0 - alpha) + true * (2.0 * alpha - 1.0)
    if gamma == 1.5:
        mod = one_minus_pt * jnp.sqrt(one_minus_pt)
    else:
        mod = one_minus_pt ** gamma
    return bce * alpha_factor * mod


def _focal_kernel(pred_ref, true_ref, out_ref, *, gamma, alpha,
                  block_rows, total_rows, need_mask):
    pred = pred_ref[...].astype(jnp.float32)
    true = true_ref[...].astype(jnp.float32)

    # BCEWithLogitsLoss (reduction='none'), numerically stable; the exp is
    # shared with the sigmoid below.  One pred>=0 predicate is reused.
    pos = pred >= 0.0
    e = jnp.exp(-jnp.abs(pred))                               # EUP exp (once)
    bce = jnp.where(pos, pred, 0.0) - pred * true + jnp.log1p(e)

    # sigmoid(pred) from the shared exp:
    #   pred >= 0 : 1 / (1 + e)        pred < 0 : e / (1 + e)
    # approx reciprocal -> single EUP vrcp (relerr ~1e-4, fine for a mean loss).
    pred_prob = jnp.where(pos, 1.0, e) * pl.reciprocal(1.0 + e, approx=True)

    # 1 - p_t = p + t - 2*p*t   (folded; clamp guards f32 rounding when p_t~1)
    one_minus_pt = jnp.maximum(pred_prob + true - 2.0 * pred_prob * true, 0.0)

    # alpha_factor = (1-a) + t*(2a-1)   (folded blend)
    alpha_factor = (1.0 - alpha) + true * (2.0 * alpha - 1.0)

    if gamma == 1.5:
        modulating = one_minus_pt * jnp.sqrt(one_minus_pt)
    elif float(gamma).is_integer():
        modulating = one_minus_pt ** int(gamma)
    else:
        modulating = one_minus_pt ** gamma

    loss = bce * alpha_factor * modulating

    if need_mask:
        # Ragged last block: rows past total_rows were read out of bounds and
        # hold garbage.  Select (not multiply) so NaNs there are discarded.
        row = (lax.broadcasted_iota(jnp.int32, loss.shape, 0)
               + pl.program_id(0) * block_rows)
        loss = jnp.where(row < total_rows, loss, 0.0)

    # Fold the (block_rows,128) tile down to one lane-dense (8,128) partial
    # sum.  The reshape only splits the major axis (tile-aligned, no VMEM
    # copy) and the axis-0 sum is pure VPU vector adds (no XLU per step).
    out_ref[...] = jnp.sum(
        loss.reshape(block_rows // OUT_SUBLANES, OUT_SUBLANES, LANES), axis=0)


def focal_loss(pred, true, gamma=1.5, alpha=0.25, reduction='mean'):
    """FocalLoss(nn.BCEWithLogitsLoss(reduction=reduction), gamma, alpha)(pred, true)."""
    assert pred.shape == true.shape
    gamma = float(gamma)
    alpha = float(alpha)

    if reduction not in ('mean', 'sum'):
        # Matches the torch module's `else: return loss` branch.
        # TODO(synk): the Pallas kernel is specialised to the reduced form;
        # the elementwise output stays in fused XLA.
        return _focal_elementwise(pred, true, gamma, alpha)

    n = int(math.prod(pred.shape))

    # Fast path: tiny inputs (pallas launch + pipeline prologue dominate) or
    # inputs that cannot be viewed as (rows, 128) without a padded HBM copy.
    if n < MIN_KERNEL_ELEMS or n % LANES != 0:
        total = jnp.sum(_focal_elementwise(pred, true, gamma, alpha))
        return total / jnp.float32(n) if reduction == 'mean' else total

    rows = n // LANES

    # dtype-aware tiling: block rows are a multiple of both inputs' native
    # sublane tiles; block bytes target ~4 MiB per input per step.
    sub = max(_sublane_tile(pred.dtype), _sublane_tile(true.dtype))
    max_item = max(jnp.dtype(pred.dtype).itemsize,
                   jnp.dtype(true.dtype).itemsize)
    target_rows = max(sub, (TARGET_BLOCK_BYTES // (LANES * max_item)) // sub * sub)
    if rows <= target_rows:
        # Split into (at least) two blocks so the 'parallel' grid axis can use
        # both TensorCores on v7x.
        block_rows = max(sub, pl.cdiv(pl.cdiv(rows, 2), sub) * sub)
    else:
        block_rows = target_rows
    num_blocks = pl.cdiv(rows, block_rows)
    need_mask = (rows % block_rows) != 0

    # Layout-preserving views: no pad, no HBM copy, native dtypes kept.
    pred2 = jnp.ravel(pred).reshape(rows, LANES)
    true2 = jnp.ravel(true).reshape(rows, LANES)

    kernel = functools.partial(
        _focal_kernel, gamma=gamma, alpha=alpha, block_rows=block_rows,
        total_rows=rows, need_mask=need_mask)

    # VMEM budget: 2 inputs x 2 pipeline buffers x block bytes (+ tiny output).
    blk_bytes = block_rows * LANES * (jnp.dtype(pred.dtype).itemsize
                                      + jnp.dtype(true.dtype).itemsize)
    in_flight = 2 * blk_bytes + 2 * OUT_SUBLANES * LANES * 4
    vmem_limit = int(min(48 << 20, max(32 << 20, in_flight + (8 << 20))))

    cost = pl.CostEstimate(
        flops=20 * n,
        transcendentals=4 * n,
        bytes_accessed=(n * (jnp.dtype(pred.dtype).itemsize
                             + jnp.dtype(true.dtype).itemsize)
                        + num_blocks * OUT_SUBLANES * LANES * 4))

    partials = pl.pallas_call(
        kernel,
        out_shape=jax.ShapeDtypeStruct((num_blocks * OUT_SUBLANES, LANES),
                                       jnp.float32),
        grid_spec=pl.GridSpec(
            grid=(num_blocks,),
            in_specs=[
                pl.BlockSpec((block_rows, LANES), lambda i: (i, 0)),
                pl.BlockSpec((block_rows, LANES), lambda i: (i, 0)),
            ],
            out_specs=pl.BlockSpec((OUT_SUBLANES, LANES), lambda i: (i, 0)),
        ),
        compiler_params=pltpu.CompilerParams(
            dimension_semantics=("parallel",),
            vmem_limit_bytes=vmem_limit),
        cost_estimate=cost,
    )(pred2, true2)

    # reduction: tiny final reduce in XLA (partials are negligible traffic).
    total = jnp.sum(partials)
    if reduction == 'mean':
        return total / jnp.float32(n)
    return total


def _reference(pred, true, gamma=1.5, alpha=0.25):
    # Direct transcription of the torch module (unfolded), for checking.
    pred = pred.astype(jnp.float32)
    true = true.astype(jnp.float32)
    bce = (jnp.maximum(pred, 0.0) - pred * true
           + jnp.log1p(jnp.exp(-jnp.abs(pred))))
    p = jax.nn.sigmoid(pred)
    p_t = true * p + (1 - true) * (1 - p)
    af = true * alpha + (1 - true) * (1 - alpha)
    mf = (1.0 - p_t) ** gamma
    return jnp.mean(bce * af * mf)


if __name__ == "__main__":
    key = jax.random.PRNGKey(0)
    k1, k2, k3, k4 = jax.random.split(key, 4)

    # 1) Kernel path: yolov5 P3 objectness logits (bs, na, h, w) = (2, 3, 80, 80).
    shape = (2, 3, 80, 80)
    pred = jax.random.normal(k1, shape, dtype=jnp.float32) * 2.0
    true = (jax.random.uniform(k2, shape) > 0.7).astype(jnp.float32)
    out = jax.block_until_ready(focal_loss(pred, true))
    ref = _reference(pred, true)
    assert jnp.allclose(out, ref, rtol=5e-3, atol=1e-6), (out, ref)

    # 2) Kernel path, bf16 inputs (exercises the 16-row sublane tile).
    pred_bf = pred.astype(jnp.bfloat16)
    true_bf = true.astype(jnp.bfloat16)
    out_bf = jax.block_until_ready(focal_loss(pred_bf, true_bf))
    ref_bf = _reference(pred_bf, true_bf)
    assert jnp.allclose(out_bf, ref_bf, rtol=5e-3, atol=1e-6), (out_bf, ref_bf)

    # 3) Small-input fast path (no pallas launch): (2, 4, 16, 16).
    shape_s = (2, 4, 16, 16)
    pred_s = jax.random.normal(k3, shape_s, dtype=jnp.float32) * 2.0
    true_s = (jax.random.uniform(k4, shape_s) > 0.7).astype(jnp.float32)
    out_s = jax.block_until_ready(focal_loss(pred_s, true_s))
    ref_s = _reference(pred_s, true_s)
    assert jnp.allclose(out_s, ref_s, rtol=1e-5, atol=1e-6), (out_s, ref_s)

    print("KERNEL_OK")
</pallas_src>

<mosaic_0001>
module attributes {stable_mosaic.version = 11 : i64} {
  func.func @_focal_kernel(%arg0: i32, %arg1: memref<152x128xf32, #tpu.memory_space<vmem>>, %arg2: memref<152x128xf32, #tpu.memory_space<vmem>>, %arg3: memref<8x128xf32, #tpu.memory_space<vmem>>) attributes {dimension_semantics = [#tpu.dimension_semantics<parallel>], iteration_bounds = array<i64: 2>, scalar_prefetch = 0 : i64, scratch_operands = 0 : i64, tpu.core_type = #tpu.core_type<tc>, window_params = [{transform_indices = @transform_0, window_bounds = array<i64: 152, 128>}, {transform_indices = @transform_1, window_bounds = array<i64: 152, 128>}, {transform_indices = @transform_2, window_bounds = array<i64: 8, 128>}]} {
    %c0 = arith.constant 0 : index
    %c0_0 = arith.constant 0 : index
    %0 = vector.load %arg1[%c0, %c0_0] : memref<152x128xf32, #tpu.memory_space<vmem>>, vector<152x128xf32>
    %c0_1 = arith.constant 0 : index
    %c0_2 = arith.constant 0 : index
    %1 = vector.load %arg2[%c0_1, %c0_2] : memref<152x128xf32, #tpu.memory_space<vmem>>, vector<152x128xf32>
    %cst = arith.constant 0.000000e+00 : f32
    %2 = vector.broadcast %cst : f32 to vector<152x128xf32>
    %3 = arith.cmpf oge, %0, %2 : vector<152x128xf32>
    %4 = math.absf %0 : vector<152x128xf32>
    %cst_3 = arith.constant 0.000000e+00 : f32
    %5 = vector.broadcast %cst_3 : f32 to vector<152x128xf32>
    %6 = arith.subf %5, %4 : vector<152x128xf32>
    %7 = math.exp %6 : vector<152x128xf32>
    %cst_4 = arith.constant 0.000000e+00 : f32
    %8 = vector.broadcast %cst_4 : f32 to vector<152x128xf32>
    %9 = arith.select %3, %0, %8 : vector<152x128xi1>, vector<152x128xf32>
    %10 = arith.mulf %0, %1 : vector<152x128xf32>
    %11 = arith.subf %9, %10 : vector<152x128xf32>
    %12 = math.log1p %7 : vector<152x128xf32>
    %13 = arith.addf %11, %12 : vector<152x128xf32>
    %cst_5 = arith.constant 1.000000e+00 : f32
    %14 = vector.broadcast %cst_5 : f32 to vector<152x128xf32>
    %15 = arith.select %3, %14, %7 : vector<152x128xi1>, vector<152x128xf32>
    %cst_6 = arith.constant 1.000000e+00 : f32
    %16 = vector.broadcast %cst_6 : f32 to vector<152x128xf32>
    %17 = arith.addf %16, %7 : vector<152x128xf32>
    %18 = tpu.reciprocal %17 {approx = true} : vector<152x128xf32> -> vector<152x128xf32>
    %19 = arith.mulf %15, %18 : vector<152x128xf32>
    %20 = arith.addf %19, %1 : vector<152x128xf32>
    %cst_7 = arith.constant 2.000000e+00 : f32
    %21 = vector.broadcast %cst_7 : f32 to vector<152x128xf32>
    %22 = arith.mulf %21, %19 : vector<152x128xf32>
    %23 = arith.mulf %22, %1 : vector<152x128xf32>
    %24 = arith.subf %20, %23 : vector<152x128xf32>
    %cst_8 = arith.constant 0.000000e+00 : f32
    %25 = vector.broadcast %cst_8 : f32 to vector<152x128xf32>
    %26 = arith.maximumf %24, %25 : vector<152x128xf32>
    %cst_9 = arith.constant -5.000000e-01 : f32
    %27 = vector.broadcast %cst_9 : f32 to vector<152x128xf32>
    %28 = arith.mulf %1, %27 : vector<152x128xf32>
    %cst_10 = arith.constant 7.500000e-01 : f32
    %29 = vector.broadcast %cst_10 : f32 to vector<152x128xf32>
    %30 = arith.addf %29, %28 : vector<152x128xf32>
    %31 = math.sqrt %26 : vector<152x128xf32>
    %32 = arith.mulf %26, %31 : vector<152x128xf32>
    %33 = arith.mulf %13, %30 : vector<152x128xf32>
    %34 = arith.mulf %33, %32 : vector<152x128xf32>
    %35 = tpu.iota {dimensions = array<i32: 0>} : vector<152x128xi32>
    %c152_i32 = arith.constant 152 : i32
    %36 = arith.muli %arg0, %c152_i32 : i32
    %37 = vector.broadcast %36 : i32 to vector<152x128xi32>
    %38 = arith.addi %35, %37 : vector<152x128xi32>
    %c300_i32 = arith.constant 300 : i32
    %39 = vector.broadcast %c300_i32 : i32 to vector<152x128xi32>
    %40 = arith.cmpi slt, %38, %39 : vector<152x128xi32>
    %cst_11 = arith.constant 0.000000e+00 : f32
    %41 = vector.broadcast %cst_11 : f32 to vector<152x128xf32>
    %42 = arith.select %40, %34, %41 : vector<152x128xi1>, vector<152x128xf32>
    %43 = vector.shape_cast %42 : vector<152x128xf32> to vector<19x8x128xf32>
    %cst_12 = arith.constant dense<0.000000e+00> : vector<8x128xf32>
    %44 = vector.multi_reduction <add>, %43, %cst_12 [0] : vector<19x8x128xf32> to vector<8x128xf32>
    %c0_13 = arith.constant 0 : index
    %c0_14 = arith.constant 0 : index
    %45 = vector.load %arg3[%c0_13, %c0_14] : memref<8x128xf32, #tpu.memory_space<vmem>>, vector<8x128xf32>
    tpu.vector_store %arg3[%c0_13, %c0_14], %44 {strides = array<i32>} : memref<8x128xf32, #tpu.memory_space<vmem>>, vector<8x128xf32>,
    return
  }
  func.func @transform_0(%arg0: i32) -> (i32, i32) {
    %c0_i32 = arith.constant 0 : i32
    %c0_i32_0 = arith.constant 0 : i32
    return %arg0, %c0_i32 : i32, i32
  }
  func.func @transform_1(%arg0: i32) -> (i32, i32) {
    %c0_i32 = arith.constant 0 : i32
    %c0_i32_0 = arith.constant 0 : i32
    return %arg0, %c0_i32 : i32, i32
  }
  func.func @transform_2(%arg0: i32) -> (i32, i32) {
    %c0_i32 = arith.constant 0 : i32
    %c0_i32_0 = arith.constant 0 : i32
    return %arg0, %c0_i32 : i32, i32
  }
}

</mosaic_0001>

<llo_original>
// kernel: tpu_custom_call.1
$region0: #{tpu_custom_call.1}
  #allocation0 [shape = 'u32[]', space=smem, size = 0x4, offset = 0x4, fixed_abs, tag = 'smem constant byte address 0x4 - core index']
  #allocation1 [shape = 'u32[144,128]{1,0:T(1,128)}', space=vmem, size = 0x12000, scoped, tag = 'internal scratch']
  %s0 = inlined_call_operand.hbm [shape: f32[300,128], index: 0, kind: input, shape index: {}]
  %s1 = inlined_call_operand.hbm [shape: f32[300,128], index: 1, kind: input, shape index: {}]
  %s2 = inlined_call_operand.hbm [shape: f32[16,128], index: 2, kind: output, shape index: {}]
  %s3 = sld [smem:[#allocation0]]
  $region49: #{tpu_custom_call.1} parent=0
    _
  %s5 = ssub.s32 1, %s3
  %s6 = scalar_select 0, %s5, %s3
  $region1: #{tpu_custom_call.1} parent=0
    #allocation2 [shape = 'u8[155648]{0}', space=vmem, size = 0x26000, scoped, tag = 'input window, operand 0']
    #allocation3 [shape = 's32[2]{0}', space=sflag, size = 0x8, scoped, tag = 'scoped memory for tpu_custom_call.1']
    #allocation4 [shape = 's32[2]{0}', space=sflag, size = 0x8, scoped, tag = 'scoped memory for tpu_custom_call.1']
    #allocation5 [shape = 'u8[155648]{0}', space=vmem, size = 0x26000, scoped, tag = 'input window, operand 1']
    #allocation6 [shape = 's32[2]{0}', space=sflag, size = 0x8, scoped, tag = 'scoped memory for tpu_custom_call.1']
    #allocation7 [shape = 'u8[8192]{0}', space=vmem, size = 0x2000, scoped, tag = 'output window, operand 0']
    %7 = vsyncpa [#allocation3], 0
    %s8 = scalar_lea.sflag [#allocation3], 1
    %9 = vsyncpa %s8, 0
    %10 = vsyncpa [#allocation6], 0
    %s11 = scalar_lea.sflag [#allocation6], 1
    %12 = vsyncpa %s11, 0
    %13 = vsyncpa [#allocation4], 0
    %s14 = scalar_lea.sflag [#allocation4], 1
    %15 = vsyncpa %s14, 0
    loop: start=0, step=1, limit=4
    $region2: #{tpu_custom_call.1} parent=1 // loop_pre_header
      _
    $region3: #{tpu_custom_call.1} parent=1 // loop_header
      %s17 = sphi 0, %s21
      %p18 = scmp.ge.s32.totalorder %s17, 4
      %s27 = sphi 0, %s29
      %s30 = sphi 0, %s27
      %s31 = sphi 0, %s30
      %s47 = sphi 0, %s31
      %s53 = sphi 0, %s55
      %s56 = sphi 0, %s53
      %s57 = sphi 0, %s56
      %s73 = sphi 0, %s57
      %s79 = sphi 0, %s81
      %s82 = sphi 0, %s79
      %s83 = sphi 0, %s82
      %s99 = sphi 0, %s83
    $region4: #{tpu_custom_call.1} parent=1 // loop_header_branch
      %20 = sbr.rel (%p18) target = $region8
    $region5: #{tpu_custom_call.1} parent=1 // loop_body
      %s22 = ssub.s32 %s17, 1
      %s23 = ssub.s32 %s17, 2
      %s24 = sadd.s32 %s17, 1
      %s25 = ssub.s32 %s17, %s24
      %p26 = scmp.eq.s32.totalorder %s25, 0
      %s28 = sadd.s32 %s27, 1
      %s29 = scalar_select %p26, %s27, %s28
      %p32 = pneg %p26
      %p33 = scmp.eq.s32.totalorder %s17, 1
      %p34 = por %p32, %p33
      %p35 = scmp.ne.s32.totalorder %s27, %s30
      %p36 = scmp.eq.s32.totalorder %s17, 0
      %p37 = por %p35, %p36
      %p38 = scmp.ne.s32.totalorder %s27, %s30
      %p39 = scmp.eq.s32.totalorder %s22, 1
      %p40 = por %p38, %p39
      %p41 = scmp.ne.s32.totalorder %s30, %s31
      %p42 = scmp.eq.s32.totalorder %s22, 0
      %p43 = por %p41, %p42
      %p44 = scmp.ne.s32.totalorder %s30, %s31
      %p45 = scmp.eq.s32.totalorder %s23, 1
      %p46 = por %p44, %p45
      %p48 = scmp.ne.s32.totalorder %s31, %s47
      %p49 = scmp.eq.s32.totalorder %s23, 0
      %p50 = por %p48, %p49
      %s51 = ssub.s32 %s17, %s24
      %p52 = scmp.eq.s32.totalorder %s51, 0
      %s54 = sadd.s32 %s53, 1
      %s55 = scalar_select %p52, %s53, %s54
      %p58 = pneg %p52
      %p59 = scmp.eq.s32.totalorder %s17, 1
      %p60 = por %p58, %p59
      %p61 = scmp.ne.s32.totalorder %s53, %s56
      %p62 = scmp.eq.s32.totalorder %s17, 0
      %p63 = por %p61, %p62
      %p64 = scmp.ne.s32.totalorder %s53, %s56
      %p65 = scmp.eq.s32.totalorder %s22, 1
      %p66 = por %p64, %p65
      %p67 = scmp.ne.s32.totalorder %s56, %s57
      %p68 = scmp.eq.s32.totalorder %s22, 0
      %p69 = por %p67, %p68
      %p70 = scmp.ne.s32.totalorder %s56, %s57
      %p71 = scmp.eq.s32.totalorder %s23, 1
      %p72 = por %p70, %p71
      %p74 = scmp.ne.s32.totalorder %s57, %s73
      %p75 = scmp.eq.s32.totalorder %s23, 0
      %p76 = por %p74, %p75
      %s77 = ssub.s32 %s17, %s24
      %p78 = scmp.eq.s32.totalorder %s77, 0
      %s80 = sadd.s32 %s79, 1
      %s81 = scalar_select %p78, %s79, %s80
      %p84 = pneg %p78
      %p85 = scmp.eq.s32.totalorder %s17, 1
      %p86 = por %p84, %p85
      %p87 = scmp.ne.s32.totalorder %s79, %s82
      %p88 = scmp.eq.s32.totalorder %s17, 0
      %p89 = por %p87, %p88
      %p90 = scmp.ne.s32.totalorder %s79, %s82
      %p91 = scmp.eq.s32.totalorder %s22, 1
      %p92 = por %p90, %p91
      %p93 = scmp.ne.s32.totalorder %s82, %s83
      %p94 = scmp.eq.s32.totalorder %s22, 0
      %p95 = por %p93, %p94
      %p96 = scmp.ne.s32.totalorder %s82, %s83
      %p97 = scmp.eq.s32.totalorder %s23, 1
      %p98 = por %p96, %p97
      %p100 = scmp.ne.s32.totalorder %s83, %s99
      %p101 = scmp.eq.s32.totalorder %s23, 0
      %p102 = por %p100, %p101
      %p103 = scmp.le.s32.totalorder 1, %s17
      %p104 = scmp.lt.s32.totalorder %s17, 3
      %p105 = pnand %p103, %p104
      %p106 = pneg %p105
      // Predicated region
      $region9: #{tpu_custom_call.1} parent=5 // pred_check
        _
      $region10: #{tpu_custom_call.1} parent=5 // pred_check_branch
        %108 = sbr.rel (%p105) target = $region12
      $region11: #{tpu_custom_call.1} parent=5 // pred_region
        %s109 = ssub.s32 %s17, 1
      $region12: #{tpu_custom_call.1} parent=5 // pred_fallthru
        _
      %p110 = scmp.lt.s32.totalorder %s17, 2
      // Predicated region
      $region13: #{tpu_custom_call.1} parent=5 // pred_check
        %p111 = pneg %p110
      $region14: #{tpu_custom_call.1} parent=5 // pred_check_branch
        %113 = sbr.rel (%p111) target = $region16
      $region15: #{tpu_custom_call.1} parent=5 // pred_region
        // Predicated region
        $region17: #{tpu_custom_call.1} parent=15 // pred_check
          %p114 = pneg %p37
        $region18: #{tpu_custom_call.1} parent=15 // pred_check_branch
          %116 = sbr.rel (%p114) target = $region20
        $region19: #{tpu_custom_call.1} parent=15 // pred_region
          %s117 = sand.u32 %s27, 1
          %s118 = scalar_lea.sflag [#allocation3], %s117
          %s119 = sand.u32 %s27, 1
          %s120 = smul.addr %s119, 152
          %s121 = scalar_lea.vmem [#allocation2], %s120
          %s122 = smul.u32 19, %s17
          %s124 = ssub.s32 2432, 2432
          %125 = vsyncadd %s118, %s124
          %s126 = smul.addr %s122, 128
          %s127 = scalar_lea.hbm %s0, %s126
          %s128 = sshll.u32 %s121, 4
          %s129 = int_to_ptr.vmem [resolvable:$true] %s128
          %134 = dma.hbm_to_vmem [thread:$0]  %s127, 2432, %s129, %s118, 128, 128, 8
        $region20: #{tpu_custom_call.1} parent=15 // pred_fallthru
          _
        // Predicated region
        $region21: #{tpu_custom_call.1} parent=15 // pred_check
          %p135 = pneg %p63
        $region22: #{tpu_custom_call.1} parent=15 // pred_check_branch
          %137 = sbr.rel (%p135) target = $region24
        $region23: #{tpu_custom_call.1} parent=15 // pred_region
          %s138 = sand.u32 %s53, 1
          %s139 = scalar_lea.sflag [#allocation6], %s138
          %s140 = sand.u32 %s53, 1
          %s141 = smul.addr %s140, 152
          %s142 = scalar_lea.vmem [#allocation5], %s141
          %s143 = smul.u32 19, %s17
          %s145 = ssub.s32 2432, 2432
          %146 = vsyncadd %s139, %s145
          %s147 = smul.addr %s143, 128
          %s148 = scalar_lea.hbm %s1, %s147
          %s149 = sshll.u32 %s142, 4
          %s150 = int_to_ptr.vmem [resolvable:$true] %s149
          %155 = dma.hbm_to_vmem [thread:$0]  %s148, 2432, %s150, %s139, 128, 128, 8
        $region24: #{tpu_custom_call.1} parent=15 // pred_fallthru
          _
      $region16: #{tpu_custom_call.1} parent=5 // pred_fallthru
        _
      %p156 = scmp.le.s32.totalorder 1, %s17
      %p157 = scmp.lt.s32.totalorder %s17, 3
      %p158 = pnand %p156, %p157
      %p159 = pneg %p158
      // Predicated region
      $region25: #{tpu_custom_call.1} parent=5 // pred_check
        _
      $region26: #{tpu_custom_call.1} parent=5 // pred_check_branch
        %161 = sbr.rel (%p158) target = $region28
      $region27: #{tpu_custom_call.1} parent=5 // pred_region
        %s162 = ssub.s32 %s17, 1
        %s163 = sand.u32 %s30, 1
        %s164 = scalar_lea.sflag [#allocation3], %s163
        %s165 = sand.u32 %s30, 1
        %s166 = smul.addr %s165, 152
        %s167 = scalar_lea.vmem [#allocation2], %s166
        // Predicated region
        $region29: #{tpu_custom_call.1} parent=27 // pred_check
          %p168 = pneg %p43
        $region30: #{tpu_custom_call.1} parent=27 // pred_check_branch
          %170 = sbr.rel (%p168) target = $region32
        $region31: #{tpu_custom_call.1} parent=27 // pred_region
          %171 = dma.done %s164, 2432
        $region32: #{tpu_custom_call.1} parent=27 // pred_fallthru
          _
        %s172 = sand.u32 %s56, 1
        %s173 = scalar_lea.sflag [#allocation6], %s172
        %s174 = sand.u32 %s56, 1
        %s175 = smul.addr %s174, 152
        %s176 = scalar_lea.vmem [#allocation5], %s175
        // Predicated region
        $region33: #{tpu_custom_call.1} parent=27 // pred_check
          %p177 = pneg %p69
        $region34: #{tpu_custom_call.1} parent=27 // pred_check_branch
          %179 = sbr.rel (%p177) target = $region36
        $region35: #{tpu_custom_call.1} parent=27 // pred_region
          %180 = dma.done %s173, 2432
        $region36: #{tpu_custom_call.1} parent=27 // pred_fallthru
          _
        %s181 = sand.u32 %s30, 1
        %s182 = scalar_lea.sflag [#allocation3], %s181
        %s183 = sand.u32 %s30, 1
        %s184 = smul.addr %s183, 152
        %s185 = scalar_lea.vmem [#allocation2], %s184
        %p186 = pneg %p43
        %p187 = pneg %p40
        %s188 = sand.u32 %s56, 1
        %s189 = scalar_lea.sflag [#allocation6], %s188
        %s190 = sand.u32 %s56, 1
        %s191 = smul.addr %s190, 152
        %s192 = scalar_lea.vmem [#allocation5], %s191
        %p193 = pneg %p69
        %p194 = pneg %p66
        %p195 = pneg %p95
        %p196 = pneg %p92
        %s197 = sand.u32 %s82, 1
        %s198 = scalar_lea.sflag [#allocation4], %s197
        %s199 = sand.u32 %s82, 1
        %s200 = smul.addr %s199, 8
        %s201 = scalar_lea.vmem [#allocation7], %s200
        %s202 = smul.u32 19, %s22
        %s203 = smul.u32 19, %s22
        %v204 = vld [vmem:[%s167] sm:$0xff]
        %v205 = vld [vmem:[%s167 + $0x8] sm:$0xff]
        %v206 = vld [vmem:[%s167 + $0x10] sm:$0xff]
        %v207 = vld [vmem:[%s167 + $0x18] sm:$0xff]
        %v208 = vld [vmem:[%s167 + $0x20] sm:$0xff]
        %v209 = vld [vmem:[%s167 + $0x28] sm:$0xff]
        %v210 = vld [vmem:[%s167 + $0x30] sm:$0xff]
        %v211 = vld [vmem:[%s167 + $0x38] sm:$0xff]
        %v212 = vld [vmem:[%s167 + $0x40] sm:$0xff]
        %v213 = vld [vmem:[%s167 + $0x48] sm:$0xff]
        %v214 = vld [vmem:[%s167 + $0x50] sm:$0xff]
        %v215 = vld [vmem:[%s167 + $0x58] sm:$0xff]
        %v216 = vld [vmem:[%s167 + $0x60] sm:$0xff]
        %v217 = vld [vmem:[%s167 + $0x68] sm:$0xff]
        %v218 = vld [vmem:[%s167 + $0x70] sm:$0xff]
        %v219 = vld [vmem:[%s167 + $0x78] sm:$0xff]
        %v220 = vld [vmem:[%s167 + $0x80] sm:$0xff]
        %v221 = vld [vmem:[%s167 + $0x88] sm:$0xff]
        %v222 = vld [vmem:[%s167 + $0x90] sm:$0xff]
        %v223 = vld [vmem:[%s176] sm:$0xff]
        %v224 = vld [vmem:[%s176 + $0x8] sm:$0xff]
        %v225 = vld [vmem:[%s176 + $0x10] sm:$0xff]
        %v226 = vld [vmem:[%s176 + $0x18] sm:$0xff]
        %v227 = vld [vmem:[%s176 + $0x20] sm:$0xff]
        %v228 = vld [vmem:[%s176 + $0x28] sm:$0xff]
        %v229 = vld [vmem:[%s176 + $0x30] sm:$0xff]
        %v230 = vld [vmem:[%s176 + $0x38] sm:$0xff]
        %v231 = vld [vmem:[%s176 + $0x40] sm:$0xff]
        %v232 = vld [vmem:[%s176 + $0x48] sm:$0xff]
        %v233 = vld [vmem:[%s176 + $0x50] sm:$0xff]
        %v234 = vld [vmem:[%s176 + $0x58] sm:$0xff]
        %v235 = vld [vmem:[%s176 + $0x60] sm:$0xff]
        %v236 = vld [vmem:[%s176 + $0x68] sm:$0xff]
        %v237 = vld [vmem:[%s176 + $0x70] sm:$0xff]
        %v238 = vld [vmem:[%s176 + $0x78] sm:$0xff]
        %v239 = vld [vmem:[%s176 + $0x80] sm:$0xff]
        %v240 = vld [vmem:[%s176 + $0x88] sm:$0xff]
        %v241 = vld [vmem:[%s176 + $0x90] sm:$0xff]
        %vm242 = vcmp.ge.f32.partialorder %v204, 0.0
        %vm243 = vcmp.ge.f32.partialorder %v205, 0.0
        %vm244 = vcmp.ge.f32.partialorder %v206, 0.0
        %vm245 = vcmp.ge.f32.partialorder %v207, 0.0
        %vm246 = vcmp.ge.f32.partialorder %v208, 0.0
        %vm247 = vcmp.ge.f32.partialorder %v209, 0.0
        %vm248 = vcmp.ge.f32.partialorder %v210, 0.0
        %vm249 = vcmp.ge.f32.partialorder %v211, 0.0
        %vm250 = vcmp.ge.f32.partialorder %v212, 0.0
        %vm251 = vcmp.ge.f32.partialorder %v213, 0.0
        %vm252 = vcmp.ge.f32.partialorder %v214, 0.0
        %vm253 = vcmp.ge.f32.partialorder %v215, 0.0
        %vm254 = vcmp.ge.f32.partialorder %v216, 0.0
        %vm255 = vcmp.ge.f32.partialorder %v217, 0.0
        %vm256 = vcmp.ge.f32.partialorder %v218, 0.0
        %vm257 = vcmp.ge.f32.partialorder %v219, 0.0
        %vm258 = vcmp.ge.f32.partialorder %v220, 0.0
        %vm259 = vcmp.ge.f32.partialorder %v221, 0.0
        %vm260 = vcmp.ge.f32.partialorder %v222, 0.0
        %v261 = vand.u32 2147483647, %v204
        %v262 = vand.u32 2147483647, %v205
        %v263 = vand.u32 2147483647, %v206
        %v264 = vand.u32 2147483647, %v207
        %v265 = vand.u32 2147483647, %v208
        %v266 = vand.u32 2147483647, %v209
        %v267 = vand.u32 2147483647, %v210
        %v268 = vand.u32 2147483647, %v211
        %v269 = vand.u32 2147483647, %v212
        %v270 = vand.u32 2147483647, %v213
        %v271 = vand.u32 2147483647, %v214
        %v272 = vand.u32 2147483647, %v215
        %v273 = vand.u32 2147483647, %v216
        %v274 = vand.u32 2147483647, %v217
        %v275 = vand.u32 2147483647, %v218
        %v276 = vand.u32 2147483647, %v219
        %v277 = vand.u32 2147483647, %v220
        %v278 = vand.u32 2147483647, %v221
        %v279 = vand.u32 2147483647, %v222
        %v280 = vsub.f32 0.0, %v261
        %v281 = vsub.f32 0.0, %v262
        %v282 = vsub.f32 0.0, %v263
        %v283 = vsub.f32 0.0, %v264
        %v284 = vsub.f32 0.0, %v265
        %v285 = vsub.f32 0.0, %v266
        %v286 = vsub.f32 0.0, %v267
        %v287 = vsub.f32 0.0, %v268
        %v288 = vsub.f32 0.0, %v269
        %v289 = vsub.f32 0.0, %v270
        %v290 = vsub.f32 0.0, %v271
        %v291 = vsub.f32 0.0, %v272
        %v292 = vsub.f32 0.0, %v273
        %v293 = vsub.f32 0.0, %v274
        %v294 = vsub.f32 0.0, %v275
        %v295 = vsub.f32 0.0, %v276
        %v296 = vsub.f32 0.0, %v277
        %v297 = vsub.f32 0.0, %v278
        %v298 = vsub.f32 0.0, %v279
        %v299 = vmul.f32 %v280, 1.442695
        %v300 = vpow.pop %v299
        %v301 = vmul.f32 %v281, 1.442695
        %v302 = vpow.pop %v301
        %v303 = vmul.f32 %v282, 1.442695
        %v304 = vpow.pop %v303
        %v305 = vmul.f32 %v283, 1.442695
        %v306 = vpow.pop %v305
        %v307 = vmul.f32 %v284, 1.442695
        %v308 = vpow.pop %v307
        %v309 = vmul.f32 %v285, 1.442695
        %v310 = vpow.pop %v309
        %v311 = vmul.f32 %v286, 1.442695
        %v312 = vpow.pop %v311
        %v313 = vmul.f32 %v287, 1.442695
        %v314 = vpow.pop %v313
        %v315 = vmul.f32 %v288, 1.442695
        %v316 = vpow.pop %v315
        %v317 = vmul.f32 %v289, 1.442695
        %v318 = vpow.pop %v317
        %v319 = vmul.f32 %v290, 1.442695
        %v320 = vpow.pop %v319
        %v321 = vmul.f32 %v291, 1.442695
        %v322 = vpow.pop %v321
        %v323 = vmul.f32 %v292, 1.442695
        %v324 = vpow.pop %v323
        %v325 = vmul.f32 %v293, 1.442695
        %v326 = vpow.pop %v325
        %v327 = vmul.f32 %v294, 1.442695
        %v328 = vpow.pop %v327
        %v329 = vmul.f32 %v295, 1.442695
        %v330 = vpow.pop %v329
        %v331 = vmul.f32 %v296, 1.442695
        %v332 = vpow.pop %v331
        %v333 = vmul.f32 %v297, 1.442695
        %v334 = vpow.pop %v333
        %v335 = vmul.f32 %v298, 1.442695
        %v336 = vpow.pop %v335
        %v337 = vsel %vm242, %v204, 0.0
        %v338 = vsel %vm243, %v205, 0.0
        %v339 = vsel %vm244, %v206, 0.0
        %v340 = vsel %vm245, %v207, 0.0
        %v341 = vsel %vm246, %v208, 0.0
        %v342 = vsel %vm247, %v209, 0.0
        %v343 = vsel %vm248, %v210, 0.0
        %v344 = vsel %vm249, %v211, 0.0
        %v345 = vsel %vm250, %v212, 0.0
        %v346 = vsel %vm251, %v213, 0.0
        %v347 = vsel %vm252, %v214, 0.0
        %v348 = vsel %vm253, %v215, 0.0
        %v349 = vsel %vm254, %v216, 0.0
        %v350 = vsel %vm255, %v217, 0.0
        %v351 = vsel %vm256, %v218, 0.0
        %v352 = vsel %vm257, %v219, 0.0
        %v353 = vsel %vm258, %v220, 0.0
        %v354 = vsel %vm259, %v221, 0.0
        %v355 = vsel %vm260, %v222, 0.0
        %v356 = vmul.f32 %v204, %v223
        %v357 = vmul.f32 %v205, %v224
        %v358 = vmul.f32 %v206, %v225
        %v359 = vmul.f32 %v207, %v226
        %v360 = vmul.f32 %v208, %v227
        %v361 = vmul.f32 %v209, %v228
        %v362 = vmul.f32 %v210, %v229
        %v363 = vmul.f32 %v211, %v230
        %v364 = vmul.f32 %v212, %v231
        %v365 = vmul.f32 %v213, %v232
        %v366 = vmul.f32 %v214, %v233
        %v367 = vmul.f32 %v215, %v234
        %v368 = vmul.f32 %v216, %v235
        %v369 = vmul.f32 %v217, %v236
        %v370 = vmul.f32 %v218, %v237
        %v371 = vmul.f32 %v219, %v238
        %v372 = vmul.f32 %v220, %v239
        %v373 = vmul.f32 %v221, %v240
        %v374 = vmul.f32 %v222, %v241
        %v375 = vsub.f32 %v337, %v356
        %v376 = vsub.f32 %v338, %v357
        %v377 = vsub.f32 %v339, %v358
        %v378 = vsub.f32 %v340, %v359
        %v379 = vsub.f32 %v341, %v360
        %v380 = vsub.f32 %v342, %v361
        %v381 = vsub.f32 %v343, %v362
        %v382 = vsub.f32 %v344, %v363
        %v383 = vsub.f32 %v345, %v364
        %v384 = vsub.f32 %v346, %v365
        %v385 = vsub.f32 %v347, %v366
        %v386 = vsub.f32 %v348, %v367
        %v387 = vsub.f32 %v349, %v368
        %v388 = vsub.f32 %v350, %v369
        %v389 = vsub.f32 %v351, %v370
        %v390 = vsub.f32 %v352, %v371
        %v391 = vsub.f32 %v353, %v372
        %v392 = vsub.f32 %v354, %v373
        %v393 = vsub.f32 %v355, %v374
        %v394 = vadd.f32 %v300, 1.0
        %v395 = vlog2.pop %v394
        %v396 = vmul.f32 %v395, 0.6931472
        %v397 = vmul.f32 -0.5, %v300
        %v398 = vadd.f32 %v397, 1.0
        %v399 = vmul.f32 %v398, %v300
        %v400 = vand.u32 2147483647, %v300
        %vm401 = vcmp.lt.f32.partialorder %v400, 0.0004427343
        %v402 = vsel %vm401, %v399, %v396
        %v403 = vadd.f32 %v302, 1.0
        %v404 = vlog2.pop %v403
        %v405 = vmul.f32 %v404, 0.6931472
        %v406 = vmul.f32 -0.5, %v302
        %v407 = vadd.f32 %v406, 1.0
        %v408 = vmul.f32 %v407, %v302
        %v409 = vand.u32 2147483647, %v302
        %vm410 = vcmp.lt.f32.partialorder %v409, 0.0004427343
        %v411 = vsel %vm410, %v408, %v405
        %v412 = vadd.f32 %v304, 1.0
        %v413 = vlog2.pop %v412
        %v414 = vmul.f32 %v413, 0.6931472
        %v415 = vmul.f32 -0.5, %v304
        %v416 = vadd.f32 %v415, 1.0
        %v417 = vmul.f32 %v416, %v304
        %v418 = vand.u32 2147483647, %v304
        %vm419 = vcmp.lt.f32.partialorder %v418, 0.0004427343
        %v420 = vsel %vm419, %v417, %v414
        %v421 = vadd.f32 %v306, 1.0
        %v422 = vlog2.pop %v421
        %v423 = vmul.f32 %v422, 0.6931472
        %v424 = vmul.f32 -0.5, %v306
        %v425 = vadd.f32 %v424, 1.0
        %v426 = vmul.f32 %v425, %v306
        %v427 = vand.u32 2147483647, %v306
        %vm428 = vcmp.lt.f32.partialorder %v427, 0.0004427343
        %v429 = vsel %vm428, %v426, %v423
        %v430 = vadd.f32 %v308, 1.0
        %v431 = vlog2.pop %v430
        %v432 = vmul.f32 %v431, 0.6931472
        %v433 = vmul.f32 -0.5, %v308
        %v434 = vadd.f32 %v433, 1.0
        %v435 = vmul.f32 %v434, %v308
        %v436 = vand.u32 2147483647, %v308
        %vm437 = vcmp.lt.f32.partialorder %v436, 0.0004427343
        %v438 = vsel %vm437, %v435, %v432
        %v439 = vadd.f32 %v310, 1.0
        %v440 = vlog2.pop %v439
        %v441 = vmul.f32 %v440, 0.6931472
        %v442 = vmul.f32 -0.5, %v310
        %v443 = vadd.f32 %v442, 1.0
        %v444 = vmul.f32 %v443, %v310
        %v445 = vand.u32 2147483647, %v310
        %vm446 = vcmp.lt.f32.partialorder %v445, 0.0004427343
        %v447 = vsel %vm446, %v444, %v441
        %v448 = vadd.f32 %v312, 1.0
        %v449 = vlog2.pop %v448
        %v450 = vmul.f32 %v449, 0.6931472
        %v451 = vmul.f32 -0.5, %v312
        %v452 = vadd.f32 %v451, 1.0
        %v453 = vmul.f32 %v452, %v312
        %v454 = vand.u32 2147483647, %v312
        %vm455 = vcmp.lt.f32.partialorder %v454, 0.0004427343
        %v456 = vsel %vm455, %v453, %v450
        %v457 = vadd.f32 %v314, 1.0
        %v458 = vlog2.pop %v457
        %v459 = vmul.f32 %v458, 0.6931472
        %v460 = vmul.f32 -0.5, %v314
        %v461 = vadd.f32 %v460, 1.0
        %v462 = vmul.f32 %v461, %v314
        %v463 = vand.u32 2147483647, %v314
        %vm464 = vcmp.lt.f32.partialorder %v463, 0.0004427343
        %v465 = vsel %vm464, %v462, %v459
        %v466 = vadd.f32 %v316, 1.0
        %v467 = vlog2.pop %v466
        %v468 = vmul.f32 %v467, 0.6931472
        %v469 = vmul.f32 -0.5, %v316
        %v470 = vadd.f32 %v469, 1.0
        %v471 = vmul.f32 %v470, %v316
        %v472 = vand.u32 2147483647, %v316
        %vm473 = vcmp.lt.f32.partialorder %v472, 0.0004427343
        %v474 = vsel %vm473, %v471, %v468
        %v475 = vadd.f32 %v318, 1.0
        %v476 = vlog2.pop %v475
        %v477 = vmul.f32 %v476, 0.6931472
        %v478 = vmul.f32 -0.5, %v318
        %v479 = vadd.f32 %v478, 1.0
        %v480 = vmul.f32 %v479, %v318
        %v481 = vand.u32 2147483647, %v318
        %vm482 = vcmp.lt.f32.partialorder %v481, 0.0004427343
        %v483 = vsel %vm482, %v480, %v477
        %v484 = vadd.f32 %v320, 1.0
        %v485 = vlog2.pop %v484
        %v486 = vmul.f32 %v485, 0.6931472
        %v487 = vmul.f32 -0.5, %v320
        %v488 = vadd.f32 %v487, 1.0
        %v489 = vmul.f32 %v488, %v320
        %v490 = vand.u32 2147483647, %v320
        %vm491 = vcmp.lt.f32.partialorder %v490, 0.0004427343
        %v492 = vsel %vm491, %v489, %v486
        %v493 = vadd.f32 %v322, 1.0
        %v494 = vlog2.pop %v493
        %v495 = vmul.f32 %v494, 0.6931472
        %v496 = vmul.f32 -0.5, %v322
        %v497 = vadd.f32 %v496, 1.0
        %v498 = vmul.f32 %v497, %v322
        %v499 = vand.u32 2147483647, %v322
        %vm500 = vcmp.lt.f32.partialorder %v499, 0.0004427343
        %v501 = vsel %vm500, %v498, %v495
        %v502 = vadd.f32 %v324, 1.0
        %v503 = vlog2.pop %v502
        %v504 = vmul.f32 %v503, 0.6931472
        %v505 = vmul.f32 -0.5, %v324
        %v506 = vadd.f32 %v505, 1.0
        %v507 = vmul.f32 %v506, %v324
        %v508 = vand.u32 2147483647, %v324
        %vm509 = vcmp.lt.f32.partialorder %v508, 0.0004427343
        %v510 = vsel %vm509, %v507, %v504
        %v511 = vadd.f32 %v326, 1.0
        %v512 = vlog2.pop %v511
        %v513 = vmul.f32 %v512, 0.6931472
        %v514 = vmul.f32 -0.5, %v326
        %v515 = vadd.f32 %v514, 1.0
        %v516 = vmul.f32 %v515, %v326
        %v517 = vand.u32 2147483647, %v326
        %vm518 = vcmp.lt.f32.partialorder %v517, 0.0004427343
        %v519 = vsel %vm518, %v516, %v513
        %v520 = vadd.f32 %v328, 1.0
        %v521 = vlog2.pop %v520
        %v522 = vmul.f32 %v521, 0.6931472
        %v523 = vmul.f32 -0.5, %v328
        %v524 = vadd.f32 %v523, 1.0
        %v525 = vmul.f32 %v524, %v328
        %v526 = vand.u32 2147483647, %v328
        %vm527 = vcmp.lt.f32.partialorder %v526, 0.0004427343
        %v528 = vsel %vm527, %v525, %v522
        %v529 = vadd.f32 %v330, 1.0
        %v530 = vlog2.pop %v529
        %v531 = vmul.f32 %v530, 0.6931472
        %v532 = vmul.f32 -0.5, %v330
        %v533 = vadd.f32 %v532, 1.0
        %v534 = vmul.f32 %v533, %v330
        %v535 = vand.u32 2147483647, %v330
        %vm536 = vcmp.lt.f32.partialorder %v535, 0.0004427343
        %v537 = vsel %vm536, %v534, %v531
        %v538 = vadd.f32 %v332, 1.0
        %v539 = vlog2.pop %v538
        %v540 = vmul.f32 %v539, 0.6931472
        %v541 = vmul.f32 -0.5, %v332
        %v542 = vadd.f32 %v541, 1.0
        %v543 = vmul.f32 %v542, %v332
        %v544 = vand.u32 2147483647, %v332
        %vm545 = vcmp.lt.f32.partialorder %v544, 0.0004427343
        %v546 = vsel %vm545, %v543, %v540
        %v547 = vadd.f32 %v334, 1.0
        %v548 = vlog2.pop %v547
        %v549 = vmul.f32 %v548, 0.6931472
        %v550 = vmul.f32 -0.5, %v334
        %v551 = vadd.f32 %v550, 1.0
        %v552 = vmul.f32 %v551, %v334
        %v553 = vand.u32 2147483647, %v334
        %vm554 = vcmp.lt.f32.partialorder %v553, 0.0004427343
        %v555 = vsel %vm554, %v552, %v549
        %v556 = vadd.f32 %v336, 1.0
        %v557 = vlog2.pop %v556
        %v558 = vmul.f32 %v557, 0.6931472
        %v559 = vmul.f32 -0.5, %v336
        %v560 = vadd.f32 %v559, 1.0
        %v561 = vmul.f32 %v560, %v336
        %v562 = vand.u32 2147483647, %v336
        %vm563 = vcmp.lt.f32.partialorder %v562, 0.0004427343
        %v564 = vsel %vm563, %v561, %v558
        %v565 = vadd.f32 %v375, %v402
        %v566 = vadd.f32 %v376, %v411
        %v567 = vadd.f32 %v377, %v420
        %v568 = vadd.f32 %v378, %v429
        %v569 = vadd.f32 %v379, %v438
        %v570 = vadd.f32 %v380, %v447
        %v571 = vadd.f32 %v381, %v456
        %v572 = vadd.f32 %v382, %v465
        %v573 = vadd.f32 %v383, %v474
        %v574 = vadd.f32 %v384, %v483
        %v575 = vadd.f32 %v385, %v492
        %v576 = vadd.f32 %v386, %v501
        %v577 = vadd.f32 %v387, %v510
        %v578 = vadd.f32 %v388, %v519
        %v579 = vadd.f32 %v389, %v528
        %v580 = vadd.f32 %v390, %v537
        %v581 = vadd.f32 %v391, %v546
        %v582 = vadd.f32 %v392, %v555
        %v583 = vadd.f32 %v393, %v564
        %v584 = vsel %vm242, 1.0, %v300
        %v585 = vsel %vm243, 1.0, %v302
        %v586 = vsel %vm244, 1.0, %v304
        %v587 = vsel %vm245, 1.0, %v306
        %v588 = vsel %vm246, 1.0, %v308
        %v589 = vsel %vm247, 1.0, %v310
        %v590 = vsel %vm248, 1.0, %v312
        %v591 = vsel %vm249, 1.0, %v314
        %v592 = vsel %vm250, 1.0, %v316
        %v593 = vsel %vm251, 1.0, %v318
        %v594 = vsel %vm252, 1.0, %v320
        %v595 = vsel %vm253, 1.0, %v322
        %v596 = vsel %vm254, 1.0, %v324
        %v597 = vsel %vm255, 1.0, %v326
        %v598 = vsel %vm256, 1.0, %v328
        %v599 = vsel %vm257, 1.0, %v330
        %v600 = vsel %vm258, 1.0, %v332
        %v601 = vsel %vm259, 1.0, %v334
        %v602 = vsel %vm260, 1.0, %v336
        %v603 = vadd.f32 %v300, 1.0
        %v604 = vadd.f32 %v302, 1.0
        %v605 = vadd.f32 %v304, 1.0
        %v606 = vadd.f32 %v306, 1.0
        %v607 = vadd.f32 %v308, 1.0
        %v608 = vadd.f32 %v310, 1.0
        %v609 = vadd.f32 %v312, 1.0
        %v610 = vadd.f32 %v314, 1.0
        %v611 = vadd.f32 %v316, 1.0
        %v612 = vadd.f32 %v318, 1.0
        %v613 = vadd.f32 %v320, 1.0
        %v614 = vadd.f32 %v322, 1.0
        %v615 = vadd.f32 %v324, 1.0
        %v616 = vadd.f32 %v326, 1.0
        %v617 = vadd.f32 %v328, 1.0
        %v618 = vadd.f32 %v330, 1.0
        %v619 = vadd.f32 %v332, 1.0
        %v620 = vadd.f32 %v334, 1.0
        %v621 = vadd.f32 %v336, 1.0
        %v622 = vrcp.pop %v603
        %v623 = vrcp.pop %v604
        %v624 = vrcp.pop %v605
        %v625 = vrcp.pop %v606
        %v626 = vrcp.pop %v607
        %v627 = vrcp.pop %v608
        %v628 = vrcp.pop %v609
        %v629 = vrcp.pop %v610
        %v630 = vrcp.pop %v611
        %v631 = vrcp.pop %v612
        %v632 = vrcp.pop %v613
        %v633 = vrcp.pop %v614
        %v634 = vrcp.pop %v615
        %v635 = vrcp.pop %v616
        %v636 = vrcp.pop %v617
        %v637 = vrcp.pop %v618
        %v638 = vrcp.pop %v619
        %v639 = vrcp.pop %v620
        %v640 = vrcp.pop %v621
        %v641 = vmul.f32 %v584, %v622
        %v642 = vmul.f32 %v585, %v623
        %v643 = vmul.f32 %v586, %v624
        %v644 = vmul.f32 %v587, %v625
        %v645 = vmul.f32 %v588, %v626
        %v646 = vmul.f32 %v589, %v627
        %v647 = vmul.f32 %v590, %v628
        %v648 = vmul.f32 %v591, %v629
        %v649 = vmul.f32 %v592, %v630
        %v650 = vmul.f32 %v593, %v631
        %v651 = vmul.f32 %v594, %v632
        %v652 = vmul.f32 %v595, %v633
        %v653 = vmul.f32 %v596, %v634
        %v654 = vmul.f32 %v597, %v635
        %v655 = vmul.f32 %v598, %v636
        %v656 = vmul.f32 %v599, %v637
        %v657 = vmul.f32 %v600, %v638
        %v658 = vmul.f32 %v601, %v639
        %v659 = vmul.f32 %v602, %v640
        %v660 = vadd.f32 %v641, %v223
        %v661 = vadd.f32 %v642, %v224
        %v662 = vadd.f32 %v643, %v225
        %v663 = vadd.f32 %v644, %v226
        %v664 = vadd.f32 %v645, %v227
        %v665 = vadd.f32 %v646, %v228
        %v666 = vadd.f32 %v647, %v229
        %v667 = vadd.f32 %v648, %v230
        %v668 = vadd.f32 %v649, %v231
        %v669 = vadd.f32 %v650, %v232
        %v670 = vadd.f32 %v651, %v233
        %v671 = vadd.f32 %v652, %v234
        %v672 = vadd.f32 %v653, %v235
        %v673 = vadd.f32 %v654, %v236
        %v674 = vadd.f32 %v655, %v237
        %v675 = vadd.f32 %v656, %v238
        %v676 = vadd.f32 %v657, %v239
        %v677 = vadd.f32 %v658, %v240
        %v678 = vadd.f32 %v659, %v241
        %v679 = vmul.f32 %v641, 2.0
        %v680 = vmul.f32 %v642, 2.0
        %v681 = vmul.f32 %v643, 2.0
        %v682 = vmul.f32 %v644, 2.0
        %v683 = vmul.f32 %v645, 2.0
        %v684 = vmul.f32 %v646, 2.0
        %v685 = vmul.f32 %v647, 2.0
        %v686 = vmul.f32 %v648, 2.0
        %v687 = vmul.f32 %v649, 2.0
        %v688 = vmul.f32 %v650, 2.0
        %v689 = vmul.f32 %v651, 2.0
        %v690 = vmul.f32 %v652, 2.0
        %v691 = vmul.f32 %v653, 2.0
        %v692 = vmul.f32 %v654, 2.0
        %v693 = vmul.f32 %v655, 2.0
        %v694 = vmul.f32 %v656, 2.0
        %v695 = vmul.f32 %v657, 2.0
        %v696 = vmul.f32 %v658, 2.0
        %v697 = vmul.f32 %v659, 2.0
        %v698 = vmul.f32 %v679, %v223
        %v699 = vmul.f32 %v680, %v224
        %v700 = vmul.f32 %v681, %v225
        %v701 = vmul.f32 %v682, %v226
        %v702 = vmul.f32 %v683, %v227
        %v703 = vmul.f32 %v684, %v228
        %v704 = vmul.f32 %v685, %v229
        %v705 = vmul.f32 %v686, %v230
        %v706 = vmul.f32 %v687, %v231
        %v707 = vmul.f32 %v688, %v232
        %v708 = vmul.f32 %v689, %v233
        %v709 = vmul.f32 %v690, %v234
        %v710 = vmul.f32 %v691, %v235
        %v711 = vmul.f32 %v692, %v236
        %v712 = vmul.f32 %v693, %v237
        %v713 = vmul.f32 %v694, %v238
        %v714 = vmul.f32 %v695, %v239
        %v715 = vmul.f32 %v696, %v240
        %v716 = vmul.f32 %v697, %v241
        %v717 = vsub.f32 %v660, %v698
        %v718 = vsub.f32 %v661, %v699
        %v719 = vsub.f32 %v662, %v700
        %v720 = vsub.f32 %v663, %v701
        %v721 = vsub.f32 %v664, %v702
        %v722 = vsub.f32 %v665, %v703
        %v723 = vsub.f32 %v666, %v704
        %v724 = vsub.f32 %v667, %v705
        %v725 = vsub.f32 %v668, %v706
        %v726 = vsub.f32 %v669, %v707
        %v727 = vsub.f32 %v670, %v708
        %v728 = vsub.f32 %v671, %v709
        %v729 = vsub.f32 %v672, %v710
        %v730 = vsub.f32 %v673, %v711
        %v731 = vsub.f32 %v674, %v712
        %v732 = vsub.f32 %v675, %v713
        %v733 = vsub.f32 %v676, %v714
        %v734 = vsub.f32 %v677, %v715
        %v735 = vsub.f32 %v678, %v716
        %v736 = vmax.f32 %v717, 0.0
        %v737 = vmax.f32 %v718, 0.0
        %v738 = vmax.f32 %v719, 0.0
        %v739 = vmax.f32 %v720, 0.0
        %v740 = vmax.f32 %v721, 0.0
        %v741 = vmax.f32 %v722, 0.0
        %v742 = vmax.f32 %v723, 0.0
        %v743 = vmax.f32 %v724, 0.0
        %v744 = vmax.f32 %v725, 0.0
        %v745 = vmax.f32 %v726, 0.0
        %v746 = vmax.f32 %v727, 0.0
        %v747 = vmax.f32 %v728, 0.0
        %v748 = vmax.f32 %v729, 0.0
        %v749 = vmax.f32 %v730, 0.0
        %v750 = vmax.f32 %v731, 0.0
        %v751 = vmax.f32 %v732, 0.0
        %v752 = vmax.f32 %v733, 0.0
        %v753 = vmax.f32 %v734, 0.0
        %v754 = vmax.f32 %v735, 0.0
        %v755 = vmul.f32 %v223, -0.5
        %v756 = vmul.f32 %v224, -0.5
        %v757 = vmul.f32 %v225, -0.5
        %v758 = vmul.f32 %v226, -0.5
        %v759 = vmul.f32 %v227, -0.5
        %v760 = vmul.f32 %v228, -0.5
        %v761 = vmul.f32 %v229, -0.5
        %v762 = vmul.f32 %v230, -0.5
        %v763 = vmul.f32 %v231, -0.5
        %v764 = vmul.f32 %v232, -0.5
        %v765 = vmul.f32 %v233, -0.5
        %v766 = vmul.f32 %v234, -0.5
        %v767 = vmul.f32 %v235, -0.5
        %v768 = vmul.f32 %v236, -0.5
        %v769 = vmul.f32 %v237, -0.5
        %v770 = vmul.f32 %v238, -0.5
        %v771 = vmul.f32 %v239, -0.5
        %v772 = vmul.f32 %v240, -0.5
        %v773 = vmul.f32 %v241, -0.5
        %v774 = vadd.f32 %v755, 0.75
        %v775 = vadd.f32 %v756, 0.75
        %v776 = vadd.f32 %v757, 0.75
        %v777 = vadd.f32 %v758, 0.75
        %v778 = vadd.f32 %v759, 0.75
        %v779 = vadd.f32 %v760, 0.75
        %v780 = vadd.f32 %v761, 0.75
        %v781 = vadd.f32 %v762, 0.75
        %v782 = vadd.f32 %v763, 0.75
        %v783 = vadd.f32 %v764, 0.75
        %v784 = vadd.f32 %v765, 0.75
        %v785 = vadd.f32 %v766, 0.75
        %v786 = vadd.f32 %v767, 0.75
        %v787 = vadd.f32 %v768, 0.75
        %v788 = vadd.f32 %v769, 0.75
        %v789 = vadd.f32 %v770, 0.75
        %v790 = vadd.f32 %v771, 0.75
        %v791 = vadd.f32 %v772, 0.75
        %v792 = vadd.f32 %v773, 0.75
        %v793 = vrsqrt.pop %v736
        %v794 = vmul.f32 %v736, %v793
        %vm795 = vcmp.eq.f32.partialorder %v736, inf
        %v796 = vsel %vm795, %v736, %v794
        %vm797 = vcmp.eq.f32.partialorder %v736, 0.0
        %v798 = vand.u32 %v736, 2147483648
        %v799 = vsel %vm797, %v798, %v796
        %v800 = vrsqrt.pop %v737
        %v801 = vmul.f32 %v737, %v800
        %vm802 = vcmp.eq.f32.partialorder %v737, inf
        %v803 = vsel %vm802, %v737, %v801
        %vm804 = vcmp.eq.f32.partialorder %v737, 0.0
        %v805 = vand.u32 %v737, 2147483648
        %v806 = vsel %vm804, %v805, %v803
        %v807 = vrsqrt.pop %v738
        %v808 = vmul.f32 %v738, %v807
        %vm809 = vcmp.eq.f32.partialorder %v738, inf
        %v810 = vsel %vm809, %v738, %v808
        %vm811 = vcmp.eq.f32.partialorder %v738, 0.0
        %v812 = vand.u32 %v738, 2147483648
        %v813 = vsel %vm811, %v812, %v810
        %v814 = vrsqrt.pop %v739
        %v815 = vmul.f32 %v739, %v814
        %vm816 = vcmp.eq.f32.partialorder %v739, inf
        %v817 = vsel %vm816, %v739, %v815
        %vm818 = vcmp.eq.f32.partialorder %v739, 0.0
        %v819 = vand.u32 %v739, 2147483648
        %v820 = vsel %vm818, %v819, %v817
        %v821 = vrsqrt.pop %v740
        %v822 = vmul.f32 %v740, %v821
        %vm823 = vcmp.eq.f32.partialorder %v740, inf
        %v824 = vsel %vm823, %v740, %v822
        %vm825 = vcmp.eq.f32.partialorder %v740, 0.0
        %v826 = vand.u32 %v740, 2147483648
        %v827 = vsel %vm825, %v826, %v824
        %v828 = vrsqrt.pop %v741
        %v829 = vmul.f32 %v741, %v828
        %vm830 = vcmp.eq.f32.partialorder %v741, inf
        %v831 = vsel %vm830, %v741, %v829
        %vm832 = vcmp.eq.f32.partialorder %v741, 0.0
        %v833 = vand.u32 %v741, 2147483648
        %v834 = vsel %vm832, %v833, %v831
        %v835 = vrsqrt.pop %v742
        %v836 = vmul.f32 %v742, %v835
        %vm837 = vcmp.eq.f32.partialorder %v742, inf
        %v838 = vsel %vm837, %v742, %v836
        %vm839 = vcmp.eq.f32.partialorder %v742, 0.0
        %v840 = vand.u32 %v742, 2147483648
        %v841 = vsel %vm839, %v840, %v838
        %v842 = vrsqrt.pop %v743
        %v843 = vmul.f32 %v743, %v842
        %vm844 = vcmp.eq.f32.partialorder %v743, inf
        %v845 = vsel %vm844, %v743, %v843
        %vm846 = vcmp.eq.f32.partialorder %v743, 0.0
        %v847 = vand.u32 %v743, 2147483648
        %v848 = vsel %vm846, %v847, %v845
        %v849 = vrsqrt.pop %v744
        %v850 = vmul.f32 %v744, %v849
        %vm851 = vcmp.eq.f32.partialorder %v744, inf
        %v852 = vsel %vm851, %v744, %v850
        %vm853 = vcmp.eq.f32.partialorder %v744, 0.0
        %v854 = vand.u32 %v744, 2147483648
        %v855 = vsel %vm853, %v854, %v852
        %v856 = vrsqrt.pop %v745
        %v857 = vmul.f32 %v745, %v856
        %vm858 = vcmp.eq.f32.partialorder %v745, inf
        %v859 = vsel %vm858, %v745, %v857
        %vm860 = vcmp.eq.f32.partialorder %v745, 0.0
        %v861 = vand.u32 %v745, 2147483648
        %v862 = vsel %vm860, %v861, %v859
        %v863 = vrsqrt.pop %v746
        %v864 = vmul.f32 %v746, %v863
        %vm865 = vcmp.eq.f32.partialorder %v746, inf
        %v866 = vsel %vm865, %v746, %v864
        %vm867 = vcmp.eq.f32.partialorder %v746, 0.0
        %v868 = vand.u32 %v746, 2147483648
        %v869 = vsel %vm867, %v868, %v866
        %v870 = vrsqrt.pop %v747
        %v871 = vmul.f32 %v747, %v870
        %vm872 = vcmp.eq.f32.partialorder %v747, inf
        %v873 = vsel %vm872, %v747, %v871
        %vm874 = vcmp.eq.f32.partialorder %v747, 0.0
        %v875 = vand.u32 %v747, 2147483648
        %v876 = vsel %vm874, %v875, %v873
        %v877 = vrsqrt.pop %v748
        %v878 = vmul.f32 %v748, %v877
        %vm879 = vcmp.eq.f32.partialorder %v748, inf
        %v880 = vsel %vm879, %v748, %v878
        %vm881 = vcmp.eq.f32.partialorder %v748, 0.0
        %v882 = vand.u32 %v748, 2147483648
        %v883 = vsel %vm881, %v882, %v880
        %v884 = vrsqrt.pop %v749
        %v885 = vmul.f32 %v749, %v884
        %vm886 = vcmp.eq.f32.partialorder %v749, inf
        %v887 = vsel %vm886, %v749, %v885
        %vm888 = vcmp.eq.f32.partialorder %v749, 0.0
        %v889 = vand.u32 %v749, 2147483648
        %v890 = vsel %vm888, %v889, %v887
        %v891 = vrsqrt.pop %v750
        %v892 = vmul.f32 %v750, %v891
        %vm893 = vcmp.eq.f32.partialorder %v750, inf
        %v894 = vsel %vm893, %v750, %v892
        %vm895 = vcmp.eq.f32.partialorder %v750, 0.0
        %v896 = vand.u32 %v750, 2147483648
        %v897 = vsel %vm895, %v896, %v894
        %v898 = vrsqrt.pop %v751
        %v899 = vmul.f32 %v751, %v898
        %vm900 = vcmp.eq.f32.partialorder %v751, inf
        %v901 = vsel %vm900, %v751, %v899
        %vm902 = vcmp.eq.f32.partialorder %v751, 0.0
        %v903 = vand.u32 %v751, 2147483648
        %v904 = vsel %vm902, %v903, %v901
        %v905 = vrsqrt.pop %v752
        %v906 = vmul.f32 %v752, %v905
        %vm907 = vcmp.eq.f32.partialorder %v752, inf
        %v908 = vsel %vm907, %v752, %v906
        %vm909 = vcmp.eq.f32.partialorder %v752, 0.0
        %v910 = vand.u32 %v752, 2147483648
        %v911 = vsel %vm909, %v910, %v908
        %v912 = vrsqrt.pop %v753
        %v913 = vmul.f32 %v753, %v912
        %vm914 = vcmp.eq.f32.partialorder %v753, inf
        %v915 = vsel %vm914, %v753, %v913
        %vm916 = vcmp.eq.f32.partialorder %v753, 0.0
        %v917 = vand.u32 %v753, 2147483648
        %v918 = vsel %vm916, %v917, %v915
        %v919 = vrsqrt.pop %v754
        %v920 = vmul.f32 %v754, %v919
        %vm921 = vcmp.eq.f32.partialorder %v754, inf
        %v922 = vsel %vm921, %v754, %v920
        %vm923 = vcmp.eq.f32.partialorder %v754, 0.0
        %v924 = vand.u32 %v754, 2147483648
        %v925 = vsel %vm923, %v924, %v922
        %v926 = vmul.f32 %v736, %v799
        %v927 = vmul.f32 %v737, %v806
        %v928 = vmul.f32 %v738, %v813
        %v929 = vmul.f32 %v739, %v820
        %v930 = vmul.f32 %v740, %v827
        %v931 = vmul.f32 %v741, %v834
        %v932 = vmul.f32 %v742, %v841
        %v933 = vmul.f32 %v743, %v848
        %v934 = vmul.f32 %v744, %v855
        %v935 = vmul.f32 %v745, %v862
        %v936 = vmul.f32 %v746, %v869
        %v937 = vmul.f32 %v747, %v876
        %v938 = vmul.f32 %v748, %v883
        %v939 = vmul.f32 %v749, %v890
        %v940 = vmul.f32 %v750, %v897
        %v941 = vmul.f32 %v751, %v904
        %v942 = vmul.f32 %v752, %v911
        %v943 = vmul.f32 %v753, %v918
        %v944 = vmul.f32 %v754, %v925
        %v945 = vmul.f32 %v565, %v774
        %v946 = vmul.f32 %v566, %v775
        %v947 = vmul.f32 %v567, %v776
        %v948 = vmul.f32 %v568, %v777
        %v949 = vmul.f32 %v569, %v778
        %v950 = vmul.f32 %v570, %v779
        %v951 = vmul.f32 %v571, %v780
        %v952 = vmul.f32 %v572, %v781
        %v953 = vmul.f32 %v573, %v782
        %v954 = vmul.f32 %v574, %v783
        %v955 = vmul.f32 %v575, %v784
        %v956 = vmul.f32 %v576, %v785
        %v957 = vmul.f32 %v577, %v786
        %v958 = vmul.f32 %v578, %v787
        %v959 = vmul.f32 %v579, %v788
        %v960 = vmul.f32 %v580, %v789
        %v961 = vmul.f32 %v581, %v790
        %v962 = vmul.f32 %v582, %v791
        %v963 = vmul.f32 %v583, %v792
        %v964 = vmul.f32 %v945, %v926
        %v965 = vmul.f32 %v946, %v927
        %v966 = vmul.f32 %v947, %v928
        %v967 = vmul.f32 %v948, %v929
        %v968 = vmul.f32 %v949, %v930
        %v969 = vmul.f32 %v950, %v931
        %v970 = vmul.f32 %v951, %v932
        %v971 = vmul.f32 %v952, %v933
        %v972 = vmul.f32 %v953, %v934
        %v973 = vmul.f32 %v954, %v935
        %v974 = vmul.f32 %v955, %v936
        %v975 = vmul.f32 %v956, %v937
        %v976 = vmul.f32 %v957, %v938
        %v977 = vmul.f32 %v958, %v939
        %v978 = vmul.f32 %v959, %v940
        %v979 = vmul.f32 %v960, %v941
        %v980 = vmul.f32 %v961, %v942
        %v981 = vmul.f32 %v962, %v943
        %v982 = vmul.f32 %v963, %v944
        %v983 = vlaneseq
        %v984 = vshrl.u32 %v983, 7
        %v985 = vadd.s32 %v984, 8
        %v986 = vadd.s32 %v984, 16
        %v987 = vadd.s32 %v984, 24
        %v988 = vadd.s32 %v984, 32
        %v989 = vadd.s32 %v984, 40
        %v990 = vadd.s32 %v984, 48
        %v991 = vadd.s32 %v984, 56
        %v992 = vadd.s32 %v984, 64
        %v993 = vadd.s32 %v984, 72
        %v994 = vadd.s32 %v984, 80
        %v995 = vadd.s32 %v984, 88
        %v996 = vadd.s32 %v984, 96
        %v997 = vadd.s32 %v984, 104
        %v998 = vadd.s32 %v984, 112
        %v999 = vadd.s32 %v984, 120
        %v1000 = vadd.s32 %v984, 128
        %v1001 = vadd.s32 %v984, 136
        %v1002 = vadd.s32 %v984, 144
        %s1003 = smul.u32 %s22, 152
        %v1004 = vstv %s1003
        %v1005 = vadd.s32 %v984, %v1004
        %v1006 = vadd.s32 %v985, %v1004
        %v1007 = vadd.s32 %v986, %v1004
        %v1008 = vadd.s32 %v987, %v1004
        %v1009 = vadd.s32 %v988, %v1004
        %v1010 = vadd.s32 %v989, %v1004
        %v1011 = vadd.s32 %v990, %v1004
        %v1012 = vadd.s32 %v991, %v1004
        %v1013 = vadd.s32 %v992, %v1004
        %v1014 = vadd.s32 %v993, %v1004
        %v1015 = vadd.s32 %v994, %v1004
        %v1016 = vadd.s32 %v995, %v1004
        %v1017 = vadd.s32 %v996, %v1004
        %v1018 = vadd.s32 %v997, %v1004
        %v1019 = vadd.s32 %v998, %v1004
        %v1020 = vadd.s32 %v999, %v1004
        %v1021 = vadd.s32 %v1000, %v1004
        %v1022 = vadd.s32 %v1001, %v1004
        %v1023 = vadd.s32 %v1002, %v1004
        %vm1024 = vcmp.lt.s32.totalorder %v1005, 300
        %vm1025 = vcmp.lt.s32.totalorder %v1006, 300
        %vm1026 = vcmp.lt.s32.totalorder %v1007, 300
        %vm1027 = vcmp.lt.s32.totalorder %v1008, 300
        %vm1028 = vcmp.lt.s32.totalorder %v1009, 300
        %vm1029 = vcmp.lt.s32.totalorder %v1010, 300
        %vm1030 = vcmp.lt.s32.totalorder %v1011, 300
        %vm1031 = vcmp.lt.s32.totalorder %v1012, 300
        %vm1032 = vcmp.lt.s32.totalorder %v1013, 300
        %vm1033 = vcmp.lt.s32.totalorder %v1014, 300
        %vm1034 = vcmp.lt.s32.totalorder %v1015, 300
        %vm1035 = vcmp.lt.s32.totalorder %v1016, 300
        %vm1036 = vcmp.lt.s32.totalorder %v1017, 300
        %vm1037 = vcmp.lt.s32.totalorder %v1018, 300
        %vm1038 = vcmp.lt.s32.totalorder %v1019, 300
        %vm1039 = vcmp.lt.s32.totalorder %v1020, 300
        %vm1040 = vcmp.lt.s32.totalorder %v1021, 300
        %vm1041 = vcmp.lt.s32.totalorder %v1022, 300
        %vm1042 = vcmp.lt.s32.totalorder %v1023, 300
        %v1043 = vsel %vm1024, %v964, 0.0
        %v1044 = vsel %vm1025, %v965, 0.0
        %v1045 = vsel %vm1026, %v966, 0.0
        %v1046 = vsel %vm1027, %v967, 0.0
        %v1047 = vsel %vm1028, %v968, 0.0
        %v1048 = vsel %vm1029, %v969, 0.0
        %v1049 = vsel %vm1030, %v970, 0.0
        %v1050 = vsel %vm1031, %v971, 0.0
        %v1051 = vsel %vm1032, %v972, 0.0
        %v1052 = vsel %vm1033, %v973, 0.0
        %v1053 = vsel %vm1034, %v974, 0.0
        %v1054 = vsel %vm1035, %v975, 0.0
        %v1055 = vsel %vm1036, %v976, 0.0
        %v1056 = vsel %vm1037, %v977, 0.0
        %v1057 = vsel %vm1038, %v978, 0.0
        %v1058 = vsel %vm1039, %v979, 0.0
        %v1059 = vsel %vm1040, %v980, 0.0
        %v1060 = vsel %vm1041, %v981, 0.0
        %v1061 = vsel %vm1042, %v982, 0.0
        %v1062 = vadd.f32 %v1043, %v1044
        %v1063 = vadd.f32 %v1062, %v1045
        %v1064 = vadd.f32 %v1063, %v1046
        %v1065 = vadd.f32 %v1064, %v1047
        %v1066 = vadd.f32 %v1065, %v1048
        %v1067 = vadd.f32 %v1066, %v1049
        %v1068 = vadd.f32 %v1067, %v1050
        %v1069 = vadd.f32 %v1068, %v1051
        %v1070 = vadd.f32 %v1069, %v1052
        %v1071 = vadd.f32 %v1070, %v1053
        %v1072 = vadd.f32 %v1071, %v1054
        %v1073 = vadd.f32 %v1072, %v1055
        %v1074 = vadd.f32 %v1073, %v1056
        %v1075 = vadd.f32 %v1074, %v1057
        %v1076 = vadd.f32 %v1075, %v1058
        %v1077 = vadd.f32 %v1076, %v1059
        %v1078 = vadd.f32 %v1077, %v1060
        %v1079 = vadd.f32 %v1078, %v1061
        %1080 = vst [vmem:[%s201] sm:$0xff] %v1079
        %s1081 = sand.u32 %s82, 1
        %s1082 = scalar_lea.sflag [#allocation4], %s1081
        %s1083 = sand.u32 %s82, 1
        %s1084 = smul.addr %s1083, 8
        %s1085 = scalar_lea.vmem [#allocation7], %s1084
        // Predicated region
        $region37: #{tpu_custom_call.1} parent=27 // pred_check
          %p1086 = pneg %p92
        $region38: #{tpu_custom_call.1} parent=27 // pred_check_branch
          %1088 = sbr.rel (%p1086) target = $region40
        $region39: #{tpu_custom_call.1} parent=27 // pred_region
          %s1090 = ssub.s32 128, 128
          %1091 = vsyncadd %s1082, %s1090
          %s1092 = smul.addr %s22, 128
          %s1093 = scalar_lea.hbm %s2, %s1092
          %s1095 = sshll.u32 %s1085, 4
          %s1096 = int_to_ptr.vmem [resolvable:$true] %s1095
          %1098 = dma.vmem_to_hbm [thread:$0]  %s1096, 128, %s1093, %s1082
        $region40: #{tpu_custom_call.1} parent=27 // pred_fallthru
          _
      $region28: #{tpu_custom_call.1} parent=5 // pred_fallthru
        _
      %p1099 = scmp.le.s32.totalorder 2, %s17
      // Predicated region
      $region41: #{tpu_custom_call.1} parent=5 // pred_check
        %p1100 = pneg %p1099
      $region42: #{tpu_custom_call.1} parent=5 // pred_check_branch
        %1102 = sbr.rel (%p1100) target = $region44
      $region43: #{tpu_custom_call.1} parent=5 // pred_region
        %s1103 = ssub.s32 %s17, 2
        // Predicated region
        $region45: #{tpu_custom_call.1} parent=43 // pred_check
          %p1104 = pneg %p98
        $region46: #{tpu_custom_call.1} parent=43 // pred_check_branch
          %1106 = sbr.rel (%p1104) target = $region48
        $region47: #{tpu_custom_call.1} parent=43 // pred_region
          %s1107 = sand.u32 %s83, 1
          %s1108 = scalar_lea.sflag [#allocation4], %s1107
          %s1109 = sand.u32 %s83, 1
          %s1110 = smul.addr %s1109, 8
          %s1111 = scalar_lea.vmem [#allocation7], %s1110
          %1112 = dma.done %s1108, 128
        $region48: #{tpu_custom_call.1} parent=43 // pred_fallthru
          _
      $region44: #{tpu_custom_call.1} parent=5 // pred_fallthru
        _
    $region6: #{tpu_custom_call.1} parent=1 // loop_footer
      %s21 = sadd.s32 1, %s17
    $region7: #{tpu_custom_call.1} parent=1 // loop_footer_branch
      %16 = sbr.rel target = $region3
    $region8: #{tpu_custom_call.1} parent=1 // loop_exit
      _
    %1113 = vsyncpa [#allocation3], 1
    %s1114 = scalar_lea.sflag [#allocation3], 1
    %1115 = vsyncpa %s1114, 1
    %1116 = vsyncpa [#allocation6], 1
    %s1117 = scalar_lea.sflag [#allocation6], 1
    %1118 = vsyncpa %s1117, 1
    %1119 = vsyncpa [#allocation4], 1
    %s1120 = scalar_lea.sflag [#allocation4], 1
    %1121 = vsyncpa %s1120, 1

</llo_original>
